<compile_context>
chip_gen: v7x
topology: tpu7x:2x2x1
jax: 0.10.0
libtpu: 0.0.40
codegen_flags: <defaults>
</compile_context>

<pallas_src>
import math

import jax
import jax.numpy as jnp
from jax.experimental import pallas as pl
from jax.experimental.pallas import tpu as pltpu

_LANE = 128
_SLAB = 8  # accumulator sublane height (one f32 vreg row-group)


def _sublane_align(dtype) -> int:
    """Native sublane tiling for the input dtype (8 f32/i32, 16 bf16, 32 i8)."""
    itemsize = jnp.dtype(dtype).itemsize
    return max(8, 32 // max(1, itemsize))


def _pick_n_tile(n_total: int, max_lanes: int) -> int:
    """Lane-tile width: multiple of 128, capped, >=2 tiles when there's room."""
    n_lanes = ((n_total + _LANE - 1) // _LANE) * _LANE
    cap = max(_LANE, max_lanes - max_lanes % _LANE)
    tile = min(cap, n_lanes)
    # Keep at least 2 parallel N tiles when possible so v7x megacore sharding
    # ("parallel" axis) can use both TensorCores; neutral on v5e/v6e.
    if n_lanes >= 2 * _LANE:
        half = max(_LANE, (n_lanes // 2 // _LANE) * _LANE)
        tile = min(tile, half)
    return tile


def _pick_t_block(t_total: int, n_tile: int, dtype, target_bytes: int) -> int:
    """T-block rows: sublane-aligned, sized so the tile is ~target_bytes."""
    align = _sublane_align(dtype)
    itemsize = jnp.dtype(dtype).itemsize
    cap = max(align, target_bytes // max(1, n_tile * itemsize))
    cap -= cap % align
    cap = max(cap, align)
    t_full = ((t_total + align - 1) // align) * align  # rounded-up full extent
    return min(cap, t_full)


def _make_reduce_kernel(*, t_blk: int, rem_last: int, scale: float, unroll: int):
    """Sum over the T axis into a resident (8, n_tile) accumulator."""
    n_full_slabs = t_blk // _SLAB
    ragged = rem_last != t_blk                      # static python flag
    n_ragged_slabs = -(-rem_last // _SLAB)

    def kernel(x_ref, o_ref, acc_ref):
        t = pl.program_id(1)                        # reduction axis (last)
        nt = pl.num_programs(1)

        @pl.when(t == 0)
        def _init():
            acc_ref[...] = jnp.zeros_like(acc_ref)

        def accumulate(n_slabs, valid_rows):
            def body(s, carry):
                start = s * _SLAB
                slab = x_ref[pl.ds(pl.multiple_of(start, _SLAB), _SLAB), :]
                slab = slab.astype(carry.dtype)
                if valid_rows is not None:          # ragged last T block only
                    rows = jax.lax.broadcasted_iota(jnp.int32, slab.shape, 0)
                    slab = jnp.where(start + rows < valid_rows, slab, 0)
                return carry + slab

            zero = jnp.zeros(acc_ref.shape, acc_ref.dtype)
            partial = jax.lax.fori_loop(
                0, n_slabs, body, zero, unroll=max(1, min(unroll, n_slabs)))
            acc_ref[...] += partial

        if not ragged:
            accumulate(n_full_slabs, None)
        else:
            @pl.when(t < nt - 1)
            def _full_blocks():
                accumulate(n_full_slabs, None)

            @pl.when(t == nt - 1)
            def _ragged_block():
                accumulate(n_ragged_slabs, rem_last)

        @pl.when(t == nt - 1)
        def _finalize():
            # Single cross-sublane fold per N tile, then scale + cast.
            total = jnp.sum(acc_ref[...], axis=0, keepdims=True)
            if scale != 1.0:  # static branch (mean path), baked at trace time
                total = total.astype(jnp.float32) * jnp.float32(scale)
            o_ref[...] = total.astype(o_ref.dtype)

    return kernel


def output_data_to_spiking_perceptron_layer(
    x,
    average_output: bool = True,
    *,
    min_pallas_elements: int = 2 * 1024 * 1024,
    n_tile_max_lanes: int = 2048,
    target_tile_bytes: int = 8 << 20,   # raise to 12-16 MiB on v7x if desired
    slab_unroll: int = 8,
):
    """JAX/Pallas equivalent of OutputDataToSpikingPerceptronLayer.forward."""
    if isinstance(x, (list, tuple)):
        x = jnp.stack(x)  # torch.stack equivalent (plain JAX glue)
    x = jnp.asarray(x)

    t_total = x.shape[0]
    out_shape = x.shape[1:]
    scale = 1.0 if average_output else 1.0 / float(t_total)

    is_float = jnp.issubdtype(x.dtype, jnp.floating)
    acc_dtype = jnp.float32 if is_float else jnp.int32
    # torch promotes int sums to int64; with JAX's default 32-bit world we
    # emit int32 for the int sum path.  Int mean promotes to float32.
    if is_float:
        out_dtype = x.dtype
    else:
        out_dtype = jnp.int32 if average_output else jnp.float32

    # Tiny problems: pallas_call launch + grid setup dwarfs streaming time;
    # let XLA's fused reduce handle them.
    if x.size < min_pallas_elements or x.ndim < 2:
        red = jnp.sum(x.astype(acc_dtype), axis=0)
        if scale != 1.0:
            red = red.astype(jnp.float32) * jnp.float32(scale)
        return red.astype(out_dtype)

    # Lane-dense 2-D layout: [T, B, H, ...] -> [T, N]  (contiguous, free).
    n_total = math.prod(out_shape)
    x2 = x.reshape(t_total, n_total)

    n_tile = _pick_n_tile(n_total, n_tile_max_lanes)
    t_blk = _pick_t_block(t_total, n_tile, x.dtype, target_tile_bytes)

    grid_n = pl.cdiv(n_total, n_tile)
    grid_t = pl.cdiv(t_total, t_blk)
    rem_last = t_total - (grid_t - 1) * t_blk  # valid rows in last T block

    in_tile_bytes = t_blk * n_tile * jnp.dtype(x.dtype).itemsize
    vmem_limit = int(
        2 * in_tile_bytes                              # double-buffered input
        + _SLAB * n_tile * jnp.dtype(acc_dtype).itemsize   # accumulator
        + 2 * n_tile * jnp.dtype(out_dtype).itemsize       # output blocks
        + (4 << 20)                                    # headroom / internal
    )

    out = pl.pallas_call(
        _make_reduce_kernel(
            t_blk=t_blk, rem_last=rem_last, scale=scale, unroll=slab_unroll),
        out_shape=jax.ShapeDtypeStruct((1, n_total), out_dtype),
        grid_spec=pltpu.PrefetchScalarGridSpec(
            num_scalar_prefetch=0,
            grid=(grid_n, grid_t),  # reduction axis last (innermost)
            in_specs=[pl.BlockSpec((t_blk, n_tile), lambda n, t: (t, n))],
            out_specs=pl.BlockSpec((1, n_tile), lambda n, t: (0, n)),
            scratch_shapes=[pltpu.VMEM((_SLAB, n_tile), acc_dtype)],
        ),
        compiler_params=pltpu.CompilerParams(
            dimension_semantics=("parallel", "arbitrary"),
            vmem_limit_bytes=vmem_limit,
        ),
    )(x2)

    return out.reshape(out_shape)


if __name__ == "__main__":
    key = jax.random.PRNGKey(0)
    k1, k2, k3, k4 = jax.random.split(key, 4)

    # --- Pallas path (small demo shape -> force kernel via min_pallas_elements=0)
    T, B, H = 32, 4, 128
    x = jax.random.normal(k1, (T, B, H), dtype=jnp.float32)
    ref_sum = jnp.sum(x, axis=0)

    out_sum = jax.block_until_ready(
        output_data_to_spiking_perceptron_layer(
            x, average_output=True, min_pallas_elements=0))
    assert out_sum.shape == (B, H)
    assert jnp.allclose(out_sum, ref_sum, atol=1e-4, rtol=1e-4)

    # mean path (average_output=False -> mean, per the module's inverted naming)
    out_mean = jax.block_until_ready(
        output_data_to_spiking_perceptron_layer(
            x, average_output=False, min_pallas_elements=0))
    assert jnp.allclose(out_mean, jnp.mean(x, axis=0), atol=1e-5, rtol=1e-5)

    # Ragged T (37) and ragged N (300), multi-tile grid (grid_n=3, grid_t=5):
    # exercises in-kernel T masking + Pallas boundary-masked N writeback.
    xr = jax.random.normal(k2, (37, 3, 100), dtype=jnp.float32)
    out_r = jax.block_until_ready(
        output_data_to_spiking_perceptron_layer(
            xr, average_output=True, min_pallas_elements=0,
            n_tile_max_lanes=128, target_tile_bytes=8 * 128 * 4))
    assert jnp.allclose(out_r, jnp.sum(xr, axis=0), atol=1e-4, rtol=1e-4)
    out_rm = jax.block_until_ready(
        output_data_to_spiking_perceptron_layer(
            xr, average_output=False, min_pallas_elements=0,
            n_tile_max_lanes=128, target_tile_bytes=8 * 128 * 4))
    assert jnp.allclose(out_rm, jnp.mean(xr, axis=0), atol=1e-5, rtol=1e-5)

    # bf16 input: narrow-dtype DMA, f32 in-kernel accumulate, bf16 output.
    xb = x.astype(jnp.bfloat16)
    out_bf16 = jax.block_until_ready(
        output_data_to_spiking_perceptron_layer(
            xb, average_output=True, min_pallas_elements=0))
    ref_bf16 = jnp.sum(xb.astype(jnp.float32), axis=0).astype(jnp.bfloat16)
    assert jnp.allclose(out_bf16.astype(jnp.float32),
                        ref_bf16.astype(jnp.float32), atol=5e-2, rtol=5e-2)

    # int32 sum path (int32 accumulator / int32 output), ragged N lanes.
    xi = jax.random.randint(k3, (40, 2, 130), 0, 10, dtype=jnp.int32)
    out_i = jax.block_until_ready(
        output_data_to_spiking_perceptron_layer(
            xi, average_output=True, min_pallas_elements=0))
    assert jnp.array_equal(out_i, jnp.sum(xi, axis=0))

    # list-input path (torch.stack equivalent)
    out_list = jax.block_until_ready(
        output_data_to_spiking_perceptron_layer(
            [x[i] for i in range(T)], average_output=True,
            min_pallas_elements=0))
    assert jnp.allclose(out_list, ref_sum, atol=1e-4, rtol=1e-4)

    # Tiny input takes the fused-XLA fast path (default min_pallas_elements).
    x_small = jax.random.normal(k4, (8, 2, 32), dtype=jnp.float32)
    out_small = jax.block_until_ready(
        output_data_to_spiking_perceptron_layer(x_small, average_output=True))
    assert jnp.allclose(out_small, jnp.sum(x_small, axis=0), atol=1e-5, rtol=1e-5)

    print("KERNEL_OK")
</pallas_src>

<mosaic_0001>
module attributes {stable_mosaic.version = 11 : i64} {
  func.func @kernel(%arg0: i32, %arg1: i32, %arg2: memref<32x256xf32, #tpu.memory_space<vmem>>, %arg3: memref<1x256xf32, #tpu.memory_space<vmem>>, %arg4: memref<8x256xf32, #tpu.memory_space<vmem>>) attributes {dimension_semantics = [#tpu.dimension_semantics<parallel>, #tpu.dimension_semantics<arbitrary>], iteration_bounds = array<i64: 2, 1>, scalar_prefetch = 0 : i64, scratch_operands = 1 : i64, tpu.core_type = #tpu.core_type<tc>, window_params = [{transform_indices = @transform_0, window_bounds = array<i64: 32, 256>}, {transform_indices = @transform_1, window_bounds = array<i64: 1, 256>}]} {
    %c0_i32 = arith.constant 0 : i32
    %0 = arith.cmpi eq, %arg1, %c0_i32 : i32
    %1 = arith.extui %0 : i1 to i32
    %c0_i32_0 = arith.constant 0 : i32
    %2 = arith.cmpi ne, %1, %c0_i32_0 : i32
    scf.if %2 {
      %cst_14 = arith.constant 0.000000e+00 : f32
      %30 = vector.broadcast %cst_14 : f32 to vector<8x256xf32>
      %c0_15 = arith.constant 0 : index
      %c0_16 = arith.constant 0 : index
      %31 = vector.load %arg4[%c0_15, %c0_16] : memref<8x256xf32, #tpu.memory_space<vmem>>, vector<8x256xf32>
      tpu.vector_store %arg4[%c0_15, %c0_16], %30 {strides = array<i32>} : memref<8x256xf32, #tpu.memory_space<vmem>>, vector<8x256xf32>,
    } else {
    }
    %cst = arith.constant 0.000000e+00 : f32
    %3 = vector.broadcast %cst : f32 to vector<8x256xf32>
    %c0_i32_1 = arith.constant 0 : i32
    %c8_i32 = arith.constant 8 : i32
    %4 = arith.muli %c0_i32_1, %c8_i32 : i32
    %5 = tpu.assume_multiple %4, 8 : i32
    %6 = arith.index_cast %5 : i32 to index
    %c0 = arith.constant 0 : index
    %7 = vector.load %arg2[%6, %c0] : memref<32x256xf32, #tpu.memory_space<vmem>>, vector<8x256xf32>
    %8 = arith.addf %3, %7 : vector<8x256xf32>
    %c1_i32 = arith.constant 1 : i32
    %c8_i32_2 = arith.constant 8 : i32
    %9 = arith.muli %c1_i32, %c8_i32_2 : i32
    %10 = tpu.assume_multiple %9, 8 : i32
    %11 = arith.index_cast %10 : i32 to index
    %c0_3 = arith.constant 0 : index
    %12 = vector.load %arg2[%11, %c0_3] : memref<32x256xf32, #tpu.memory_space<vmem>>, vector<8x256xf32>
    %13 = arith.addf %8, %12 : vector<8x256xf32>
    %c2_i32 = arith.constant 2 : i32
    %c8_i32_4 = arith.constant 8 : i32
    %14 = arith.muli %c2_i32, %c8_i32_4 : i32
    %15 = tpu.assume_multiple %14, 8 : i32
    %16 = arith.index_cast %15 : i32 to index
    %c0_5 = arith.constant 0 : index
    %17 = vector.load %arg2[%16, %c0_5] : memref<32x256xf32, #tpu.memory_space<vmem>>, vector<8x256xf32>
    %18 = arith.addf %13, %17 : vector<8x256xf32>
    %c3_i32 = arith.constant 3 : i32
    %c8_i32_6 = arith.constant 8 : i32
    %19 = arith.muli %c3_i32, %c8_i32_6 : i32
    %20 = tpu.assume_multiple %19, 8 : i32
    %21 = arith.index_cast %20 : i32 to index
    %c0_7 = arith.constant 0 : index
    %22 = vector.load %arg2[%21, %c0_7] : memref<32x256xf32, #tpu.memory_space<vmem>>, vector<8x256xf32>
    %23 = arith.addf %18, %22 : vector<8x256xf32>
    %c4_i32 = arith.constant 4 : i32
    %c0_8 = arith.constant 0 : index
    %c0_9 = arith.constant 0 : index
    %24 = vector.load %arg4[%c0_8, %c0_9] : memref<8x256xf32, #tpu.memory_space<vmem>>, vector<8x256xf32>
    %25 = arith.addf %24, %23 : vector<8x256xf32>
    %c0_10 = arith.constant 0 : index
    %c0_11 = arith.constant 0 : index
    %26 = vector.load %arg4[%c0_10, %c0_11] : memref<8x256xf32, #tpu.memory_space<vmem>>, vector<8x256xf32>
    tpu.vector_store %arg4[%c0_10, %c0_11], %25 {strides = array<i32>} : memref<8x256xf32, #tpu.memory_space<vmem>>, vector<8x256xf32>,
    %c0_i32_12 = arith.constant 0 : i32
    %27 = arith.cmpi eq, %arg1, %c0_i32_12 : i32
    %28 = arith.extui %27 : i1 to i32
    %c0_i32_13 = arith.constant 0 : i32
    %29 = arith.cmpi ne, %28, %c0_i32_13 : i32
    scf.if %29 {
      %c0_14 = arith.constant 0 : index
      %c0_15 = arith.constant 0 : index
      %30 = vector.load %arg4[%c0_14, %c0_15] : memref<8x256xf32, #tpu.memory_space<vmem>>, vector<8x256xf32>
      %cst_16 = arith.constant dense<0.000000e+00> : vector<256xf32>
      %31 = vector.multi_reduction <add>, %30, %cst_16 [0] : vector<8x256xf32> to vector<256xf32>
      %32 = vector.shape_cast %31 : vector<256xf32> to vector<1x256xf32>
      %c0_17 = arith.constant 0 : index
      %c0_18 = arith.constant 0 : index
      %33 = vector.load %arg3[%c0_17, %c0_18] : memref<1x256xf32, #tpu.memory_space<vmem>>, vector<1x256xf32>
      tpu.vector_store %arg3[%c0_17, %c0_18], %32 {strides = array<i32>} : memref<1x256xf32, #tpu.memory_space<vmem>>, vector<1x256xf32>,
    } else {
    }
    return
  }
  func.func @transform_0(%arg0: i32, %arg1: i32) -> (i32, i32) {
    %c0_i32 = arith.constant 0 : i32
    return %arg1, %arg0 : i32, i32
  }
  func.func @transform_1(%arg0: i32, %arg1: i32) -> (i32, i32) {
    %c0_i32 = arith.constant 0 : i32
    %c0_i32_0 = arith.constant 0 : i32
    return %c0_i32, %arg0 : i32, i32
  }
}

</mosaic_0001>

<llo_original>
// kernel: tpu_custom_call.1
$region0: #{tpu_custom_call.1}
  #allocation0 [shape = 'u32[]', space=smem, size = 0x4, offset = 0x4, fixed_abs, tag = 'smem constant byte address 0x4 - core index']
  #allocation1 [shape = 'u32[144,128]{1,0:T(1,128)}', space=vmem, size = 0x12000, scoped, tag = 'internal scratch']
  #allocation2 [shape = 'f32[8,256]{1,0:T(8,128)}', space=vmem, size = 0x2000, scoped, tag = 'scratch operand']
  %s0 = inlined_call_operand.hbm [shape: f32[32,512], index: 0, kind: input, shape index: {}]
  %s1 = inlined_call_operand.hbm [shape: f32[1,512], index: 1, kind: output, shape index: {}]
  %s2 = sld [smem:[#allocation0]]
  $region49: #{tpu_custom_call.1} parent=0
    _
  %s4 = ssub.s32 1, %s2
  %s5 = scalar_select 0, %s4, %s2
  $region1: #{tpu_custom_call.1} parent=0
    #allocation3 [shape = 'u8[65536]{0}', space=vmem, size = 0x10000, scoped, tag = 'input window, operand 0']
    #allocation4 [shape = 's32[2]{0}', space=sflag, size = 0x8, scoped, tag = 'scoped memory for tpu_custom_call.1']
    #allocation5 [shape = 's32[2]{0}', space=sflag, size = 0x8, scoped, tag = 'scoped memory for tpu_custom_call.1']
    #allocation6 [shape = 'u8[2048]{0}', space=vmem, size = 0x800, scoped, tag = 'output window, operand 0']
    %6 = vsyncpa [#allocation4], 0
    %s7 = scalar_lea.sflag [#allocation4], 1
    %8 = vsyncpa %s7, 0
    %9 = vsyncpa [#allocation5], 0
    %s10 = scalar_lea.sflag [#allocation5], 1
    %11 = vsyncpa %s10, 0
    loop: start=0, step=1, limit=4
    $region2: #{tpu_custom_call.1} parent=1 // loop_pre_header
      _
    $region3: #{tpu_custom_call.1} parent=1 // loop_header
      %s13 = sphi 0, %s17
      %p14 = scmp.ge.s32.totalorder %s13, 4
      %s20 = sphi 0, %s32
      %s21 = sphi 0, %s28
      %s22 = sphi 0, %s20
      %s23 = sphi 0, %s21
      %s24 = sphi 0, %s22
      %s25 = sphi 0, %s23
      %s37 = sphi 0, %s39
      %s40 = sphi 0, %s37
      %s41 = sphi 0, %s40
      %s57 = sphi 0, %s41
      %s63 = sphi 0, %s65
      %s66 = sphi 0, %s63
      %s67 = sphi 0, %s66
      %s83 = sphi 0, %s67
    $region4: #{tpu_custom_call.1} parent=1 // loop_header_branch
      %16 = sbr.rel (%p14) target = $region8
    $region5: #{tpu_custom_call.1} parent=1 // loop_body
      %s18 = ssub.s32 %s13, 1
      %s19 = ssub.s32 %s13, 2
      %s26 = sadd.s32 1, %s21
      %p27 = scmp.ge.s32.totalorder %s26, 1
      %s28 = scalar_select %p27, 0, %s26
      %s29 = sadd.s32 1, %s20
      %s30 = scalar_select %p27, %s29, %s20
      %p31 = scmp.ge.s32.totalorder %s30, 2
      %s32 = scalar_select %p31, 0, %s30
      %s33 = ssub.s32 %s21, %s28
      %s34 = ssub.s32 %s20, %s32
      %s35 = sor.u32 %s33, %s34
      %p36 = scmp.eq.s32.totalorder %s35, 0
      %s38 = sadd.s32 %s37, 1
      %s39 = scalar_select %p36, %s37, %s38
      %p42 = pneg %p36
      %p43 = scmp.eq.s32.totalorder %s13, 1
      %p44 = por %p42, %p43
      %p45 = scmp.ne.s32.totalorder %s37, %s40
      %p46 = scmp.eq.s32.totalorder %s13, 0
      %p47 = por %p45, %p46
      %p48 = scmp.ne.s32.totalorder %s37, %s40
      %p49 = scmp.eq.s32.totalorder %s18, 1
      %p50 = por %p48, %p49
      %p51 = scmp.ne.s32.totalorder %s40, %s41
      %p52 = scmp.eq.s32.totalorder %s18, 0
      %p53 = por %p51, %p52
      %p54 = scmp.ne.s32.totalorder %s40, %s41
      %p55 = scmp.eq.s32.totalorder %s19, 1
      %p56 = por %p54, %p55
      %p58 = scmp.ne.s32.totalorder %s41, %s57
      %p59 = scmp.eq.s32.totalorder %s19, 0
      %p60 = por %p58, %p59
      %s61 = ssub.s32 %s20, %s32
      %p62 = scmp.eq.s32.totalorder %s61, 0
      %s64 = sadd.s32 %s63, 1
      %s65 = scalar_select %p62, %s63, %s64
      %p68 = pneg %p62
      %p69 = scmp.eq.s32.totalorder %s13, 1
      %p70 = por %p68, %p69
      %p71 = scmp.ne.s32.totalorder %s63, %s66
      %p72 = scmp.eq.s32.totalorder %s13, 0
      %p73 = por %p71, %p72
      %p74 = scmp.ne.s32.totalorder %s63, %s66
      %p75 = scmp.eq.s32.totalorder %s18, 1
      %p76 = por %p74, %p75
      %p77 = scmp.ne.s32.totalorder %s66, %s67
      %p78 = scmp.eq.s32.totalorder %s18, 0
      %p79 = por %p77, %p78
      %p80 = scmp.ne.s32.totalorder %s66, %s67
      %p81 = scmp.eq.s32.totalorder %s19, 1
      %p82 = por %p80, %p81
      %p84 = scmp.ne.s32.totalorder %s67, %s83
      %p85 = scmp.eq.s32.totalorder %s19, 0
      %p86 = por %p84, %p85
      %p87 = scmp.le.s32.totalorder 1, %s13
      %p88 = scmp.lt.s32.totalorder %s13, 3
      %p89 = pnand %p87, %p88
      %p90 = pneg %p89
      // Predicated region
      $region9: #{tpu_custom_call.1} parent=5 // pred_check
        _
      $region10: #{tpu_custom_call.1} parent=5 // pred_check_branch
        %92 = sbr.rel (%p89) target = $region12
      $region11: #{tpu_custom_call.1} parent=5 // pred_region
        %s93 = ssub.s32 %s13, 1
      $region12: #{tpu_custom_call.1} parent=5 // pred_fallthru
        _
      %p94 = scmp.lt.s32.totalorder %s13, 2
      // Predicated region
      $region13: #{tpu_custom_call.1} parent=5 // pred_check
        %p95 = pneg %p94
      $region14: #{tpu_custom_call.1} parent=5 // pred_check_branch
        %97 = sbr.rel (%p95) target = $region16
      $region15: #{tpu_custom_call.1} parent=5 // pred_region
        // Predicated region
        $region17: #{tpu_custom_call.1} parent=15 // pred_check
          %p98 = pneg %p47
        $region18: #{tpu_custom_call.1} parent=15 // pred_check_branch
          %100 = sbr.rel (%p98) target = $region20
        $region19: #{tpu_custom_call.1} parent=15 // pred_region
          %s101 = sand.u32 %s37, 1
          %s102 = scalar_lea.sflag [#allocation4], %s101
          %s103 = sand.u32 %s37, 1
          %s104 = smul.addr %s103, 64
          %s105 = scalar_lea.vmem [#allocation3], %s104
          %s106 = smul.u32 4, %s21
          %s107 = smul.u32 2, %s20
          %s109 = ssub.s32 1024, 1024
          %110 = vsyncadd %s102, %s109
          %s111 = smul.addr %s106, 4
          %s112 = sadd.s32 %s107, %s111
          %s113 = smul.addr %s112, 128
          %s114 = scalar_lea.hbm %s0, %s113
          %s115 = sshll.u32 %s105, 4
          %s116 = int_to_ptr.vmem [resolvable:$true] %s115
          %121 = dma.hbm_to_vmem [thread:$0]  %s114, 1024, %s116, %s102, 512, 256, 16
        $region20: #{tpu_custom_call.1} parent=15 // pred_fallthru
          _
      $region16: #{tpu_custom_call.1} parent=5 // pred_fallthru
        _
      %p122 = scmp.le.s32.totalorder 1, %s13
      %p123 = scmp.lt.s32.totalorder %s13, 3
      %p124 = pnand %p122, %p123
      %p125 = pneg %p124
      // Predicated region
      $region21: #{tpu_custom_call.1} parent=5 // pred_check
        _
      $region22: #{tpu_custom_call.1} parent=5 // pred_check_branch
        %127 = sbr.rel (%p124) target = $region24
      $region23: #{tpu_custom_call.1} parent=5 // pred_region
        %s128 = ssub.s32 %s13, 1
        %s129 = sand.u32 %s40, 1
        %s130 = scalar_lea.sflag [#allocation4], %s129
        %s131 = sand.u32 %s40, 1
        %s132 = smul.addr %s131, 64
        %s133 = scalar_lea.vmem [#allocation3], %s132
        // Predicated region
        $region25: #{tpu_custom_call.1} parent=23 // pred_check
          %p134 = pneg %p53
        $region26: #{tpu_custom_call.1} parent=23 // pred_check_branch
          %136 = sbr.rel (%p134) target = $region28
        $region27: #{tpu_custom_call.1} parent=23 // pred_region
          %137 = dma.done %s130, 1024
        $region28: #{tpu_custom_call.1} parent=23 // pred_fallthru
          _
        %s138 = sand.u32 %s40, 1
        %s139 = scalar_lea.sflag [#allocation4], %s138
        %s140 = sand.u32 %s40, 1
        %s141 = smul.addr %s140, 64
        %s142 = scalar_lea.vmem [#allocation3], %s141
        %p143 = pneg %p53
        %p144 = pneg %p50
        %p145 = pneg %p79
        %p146 = pneg %p76
        %s147 = sand.u32 %s66, 1
        %s148 = scalar_lea.sflag [#allocation5], %s147
        %s149 = sand.u32 %s66, 1
        %s150 = smul.addr %s149, 2
        %s151 = scalar_lea.vmem [#allocation6], %s150
        %s152 = smul.u32 4, %s23
        %s153 = smul.u32 2, %s22
        %s154 = smul.u32 2, %s22
        %p155 = scmp.eq.s32.totalorder %s23, 0
        // Predicated region
        $region29: #{tpu_custom_call.1} parent=23 // pred_check
          %p156 = pneg %p155
        $region30: #{tpu_custom_call.1} parent=23 // pred_check_branch
          %158 = sbr.rel (%p156) target = $region32
        $region31: #{tpu_custom_call.1} parent=23 // pred_region
          %159 = vst [vmem:[#allocation2] sm:$0xff] 0.0
          %160 = vst [vmem:[#allocation2 + $0x8] sm:$0xff] 0.0
        $region32: #{tpu_custom_call.1} parent=23 // pred_fallthru
          _
        %s161 = smul.u32 0, 2
        %s162 = smul.addr %s161, 8
        %s163 = scalar_lea.vmem %s133, %s162 [#allocation3]
        %v164 = vld [vmem:[%s163] sm:$0xff]
        %v165 = vld [vmem:[%s163 + $0x8] sm:$0xff]
        %v166 = vadd.f32 %v164, 0.0
        %v167 = vadd.f32 %v165, 0.0
        %s168 = smul.u32 1, 2
        %s169 = smul.addr %s168, 8
        %s170 = scalar_lea.vmem %s133, %s169 [#allocation3]
        %v171 = vld [vmem:[%s170] sm:$0xff]
        %v172 = vld [vmem:[%s170 + $0x8] sm:$0xff]
        %v173 = vadd.f32 %v166, %v171
        %v174 = vadd.f32 %v167, %v172
        %s175 = smul.u32 2, 2
        %s176 = smul.addr %s175, 8
        %s177 = scalar_lea.vmem %s133, %s176 [#allocation3]
        %v178 = vld [vmem:[%s177] sm:$0xff]
        %v179 = vld [vmem:[%s177 + $0x8] sm:$0xff]
        %v180 = vadd.f32 %v173, %v178
        %v181 = vadd.f32 %v174, %v179
        %s182 = smul.u32 3, 2
        %s183 = smul.addr %s182, 8
        %s184 = scalar_lea.vmem %s133, %s183 [#allocation3]
        %v185 = vld [vmem:[%s184] sm:$0xff]
        %v186 = vld [vmem:[%s184 + $0x8] sm:$0xff]
        %v187 = vadd.f32 %v180, %v185
        %v188 = vadd.f32 %v181, %v186
        %v189 = vld [vmem:[#allocation2] sm:$0xff]
        %v190 = vld [vmem:[#allocation2 + $0x8] sm:$0xff]
        %v191 = vadd.f32 %v189, %v187
        %v192 = vadd.f32 %v190, %v188
        %193 = vst [vmem:[#allocation2] sm:$0xff] %v191
        %194 = vst [vmem:[#allocation2 + $0x8] sm:$0xff] %v192
        // Predicated region
        $region33: #{tpu_custom_call.1} parent=23 // pred_check
          %p195 = pneg %p155
        $region34: #{tpu_custom_call.1} parent=23 // pred_check_branch
          %197 = sbr.rel (%p195) target = $region36
        $region35: #{tpu_custom_call.1} parent=23 // pred_region
          %v198 = vld [vmem:[#allocation2] sm:$0xff]
          %v199 = vld [vmem:[#allocation2 + $0x8] sm:$0xff]
          %v200 = vrot.slane %v198, 4
          %v201 = vadd.f32 %v198, %v200
          %v202 = vrot.slane %v201, 2
          %v203 = vadd.f32 %v201, %v202
          %v204 = vrot.slane %v203, 1
          %v205 = vadd.f32 %v203, %v204
          %v206 = vrot.slane %v199, 4
          %v207 = vadd.f32 %v199, %v206
          %v208 = vrot.slane %v207, 2
          %v209 = vadd.f32 %v207, %v208
          %v210 = vrot.slane %v209, 1
          %v211 = vadd.f32 %v209, %v210
          %v214 = vcombine.low %v205, %v211
          %v216 = vunpack.c.l.s4 1966171168
          %v217 = vunpack.c.0.s8 %v216
          %v218 = vlaneseq
          %v219 = vshrl.u32 %v218, 7
          %v220 = vsub.s32 %v217, %v219
          %v221 = vrot.slane %v214, %v220
          %v223 = vunpack.c.l.s4 1966171168
          %v224 = vunpack.c.0.s8 %v223
          %v225 = vlaneseq
          %v226 = vshrl.u32 %v225, 7
          %v227 = vsub.s32 %v224, %v226
          %v228 = vrot.slane %v221, %v227
          %v230 = vlaneseq
          %vm231 = vcmp.ge.s32.totalorder %v230, 0
          %vm232 = vcmp.lt.s32.totalorder %v230, 256
          %vm233 = vmand %vm231, %vm232
          %234 = vst.msk [vmem:[%s151] sm:$0x3] %vm233, %v228
        $region36: #{tpu_custom_call.1} parent=23 // pred_fallthru
          _
        %s235 = sand.u32 %s66, 1
        %s236 = scalar_lea.sflag [#allocation5], %s235
        %s237 = sand.u32 %s66, 1
        %s238 = smul.addr %s237, 2
        %s239 = scalar_lea.vmem [#allocation6], %s238
        // Predicated region
        $region37: #{tpu_custom_call.1} parent=23 // pred_check
          %p240 = pneg %p76
        $region38: #{tpu_custom_call.1} parent=23 // pred_check_branch
          %242 = sbr.rel (%p240) target = $region40
        $region39: #{tpu_custom_call.1} parent=23 // pred_region
          %s243 = smul.u32 2, %s22
          %s245 = ssub.s32 32, 32
          %246 = vsyncadd %s236, %s245
          %s247 = smul.addr %s243, 16
          %s248 = scalar_lea.hbm %s1, %s247
          %s250 = sshll.u32 %s239, 4
          %s251 = int_to_ptr.vmem [resolvable:$true] %s250
          %253 = dma.vmem_to_hbm [thread:$0]  %s251, 32, %s248, %s236
        $region40: #{tpu_custom_call.1} parent=23 // pred_fallthru
          _
      $region24: #{tpu_custom_call.1} parent=5 // pred_fallthru
        _
      %p254 = scmp.le.s32.totalorder 2, %s13
      // Predicated region
      $region41: #{tpu_custom_call.1} parent=5 // pred_check
        %p255 = pneg %p254
      $region42: #{tpu_custom_call.1} parent=5 // pred_check_branch
        %257 = sbr.rel (%p255) target = $region44
      $region43: #{tpu_custom_call.1} parent=5 // pred_region
        %s258 = ssub.s32 %s13, 2
        // Predicated region
        $region45: #{tpu_custom_call.1} parent=43 // pred_check
          %p259 = pneg %p82
        $region46: #{tpu_custom_call.1} parent=43 // pred_check_branch
          %261 = sbr.rel (%p259) target = $region48
        $region47: #{tpu_custom_call.1} parent=43 // pred_region
          %s262 = sand.u32 %s67, 1
          %s263 = scalar_lea.sflag [#allocation5], %s262
          %s264 = sand.u32 %s67, 1
          %s265 = smul.addr %s264, 2
          %s266 = scalar_lea.vmem [#allocation6], %s265
          %267 = dma.done %s263, 32
        $region48: #{tpu_custom_call.1} parent=43 // pred_fallthru
          _
      $region44: #{tpu_custom_call.1} parent=5 // pred_fallthru
        _
    $region6: #{tpu_custom_call.1} parent=1 // loop_footer
      %s17 = sadd.s32 1, %s13
    $region7: #{tpu_custom_call.1} parent=1 // loop_footer_branch
      %12 = sbr.rel target = $region3
    $region8: #{tpu_custom_call.1} parent=1 // loop_exit
      _
    %268 = vsyncpa [#allocation4], 1
    %s269 = scalar_lea.sflag [#allocation4], 1
    %270 = vsyncpa %s269, 1
    %271 = vsyncpa [#allocation5], 1
    %s272 = scalar_lea.sflag [#allocation5], 1
    %273 = vsyncpa %s272, 1

</llo_original>
